<compile_context>
chip_gen: v6e
topology: v6e:2x2x1
jax: 0.10.0
libtpu: 0.0.40
codegen_flags: <defaults>
</compile_context>

<pallas_src>
import functools

import jax
import jax.numpy as jnp
from jax import lax
from jax.experimental import pallas as pl
from jax.experimental.pallas import tpu as pltpu

_NEG_BIG = -3.0e38          # finite "-inf" stand-in (avoids inf-inf NaNs)
_LANE = 128
_MAX_TC = 2048              # class-block width for large C (multiple of 128)
_MAX_TM = 2048              # hard cap on rows per tile
_F32_TEMPS = 3              # estimated live f32 (tm, tc) temporaries in-kernel


def _round_up(x, m):
    return (x + m - 1) // m * m


def _vmem_plan():
    """Return (vmem_limit_bytes, per-step tile working-set budget) per chip."""
    try:
        cap = int(pltpu.get_tpu_info().vmem_capacity_bytes)
    except Exception:
        cap = 64 << 20                       # assume the smallest (v7x: 64 MiB)
    vmem_limit = min(cap * 3 // 4, 96 << 20)  # headroom for compiler scratch
    tile_budget = int(vmem_limit * 0.6)       # headroom for pipelining temps
    return vmem_limit, tile_budget


def _choose_tiles(n, c, itemsize, tile_budget):
    """Pick (tm, tc) whose f32 working set fits in `tile_budget` bytes."""
    sub = {4: 8, 2: 16, 1: 32}.get(itemsize, 8)   # sublane packing per dtype
    tc = c if c <= _MAX_TC else _MAX_TC
    streaming = tc < c
    lane_tc = max(_round_up(tc, _LANE), _LANE)    # lane-padded tile width
    bytes_per_row = (2 * lane_tc * itemsize                  # double-buffered input
                     + _F32_TEMPS * lane_tc * 4              # in-kernel f32 temps
                     + (3 * _LANE * 4 if streaming else 0))  # m / l / t scratch
    tm = max(sub, tile_budget // bytes_per_row)
    tm = min(tm, _MAX_TM)
    # Guarantee >= 2 row tiles (when N permits) so the "parallel" row axis can
    # feed both TensorCores on v7x megacore; harmless on single-core v5e/v6e.
    if n >= 2 * sub:
        tm = min(tm, _round_up(pl.cdiv(n, 2), sub))
    tm = max((tm // sub) * sub, sub)
    if tm >= n:
        tm = n          # single block equal to the full row dim (always legal)
    return tm, tc


def _ce_kernel_onepass(pred_ref, y_ref, out_ref, *,
                       n_valid, n_classes, tm, tc, mask_rows, mask_cols):
    """Fast path: the whole class dimension fits in one block (tc == C)."""
    i = pl.program_id(0)

    logits = pred_ref[...].astype(jnp.float32)              # (tm, tc)
    lane = lax.broadcasted_iota(jnp.int32, (1, tc), 1)       # one lane iota

    masked = jnp.where(lane < n_classes, logits, _NEG_BIG) if mask_cols else logits

    m = jnp.max(masked, axis=-1, keepdims=True)                       # (tm, 1)
    l = jnp.sum(jnp.exp(masked - m), axis=-1, keepdims=True)          # (tm, 1)
    t = jnp.sum(jnp.where(lane == y_ref[...], masked, 0.0),
                axis=-1, keepdims=True)                               # (tm, 1)

    per_row = m + jnp.log(l) - t
    if mask_rows:
        row = i * tm + lax.broadcasted_iota(jnp.int32, per_row.shape, 0)
        per_row = jnp.where(row < n_valid, per_row, 0.0)
    out_ref[...] = jnp.broadcast_to(jnp.sum(per_row), out_ref.shape)


def _ce_kernel_stream(pred_ref, y_ref, out_ref, m_ref, l_ref, t_ref, *,
                      n_valid, n_classes, tm, tc, mask_rows, mask_cols):
    """Streaming path: online log-sum-exp across class blocks (C > tc)."""
    i = pl.program_id(0)              # row tile   ("parallel")
    k = pl.program_id(1)              # class block ("arbitrary", innermost)
    k_last = pl.num_programs(1) - 1

    @pl.when(k == 0)
    def _():
        m_ref[...] = jnp.full_like(m_ref, _NEG_BIG)
        l_ref[...] = jnp.zeros_like(l_ref)
        t_ref[...] = jnp.zeros_like(t_ref)

    logits = pred_ref[...].astype(jnp.float32)               # (tm, tc)
    lane = lax.broadcasted_iota(jnp.int32, (1, tc), 1)        # one lane iota
    y_rel = y_ref[...] - k * tc                               # (tm, 1)

    def update(block):
        block_max = jnp.max(block, axis=-1, keepdims=True)
        m_old = m_ref[...]
        m_new = jnp.maximum(m_old, block_max)
        p_sum = jnp.sum(jnp.exp(block - m_new), axis=-1, keepdims=True)
        l_ref[...] = l_ref[...] * jnp.exp(m_old - m_new) + p_sum
        m_ref[...] = m_new
        # Target logit via one-hot select (at most one block matches each row).
        t_ref[...] += jnp.sum(jnp.where(lane == y_rel, block, 0.0),
                              axis=-1, keepdims=True)

    if mask_cols:
        # Column mask is only needed for the last (partially OOB) class block.
        @pl.when(k != k_last)
        def _():
            update(logits)

        @pl.when(k == k_last)
        def _():
            update(jnp.where(lane < (n_classes - k * tc), logits, _NEG_BIG))
    else:
        update(logits)

    @pl.when(k == k_last)
    def _():
        per_row = (m_ref[...] + jnp.log(l_ref[...])) - t_ref[...]   # (tm, 1)
        if mask_rows:
            row = i * tm + lax.broadcasted_iota(jnp.int32, per_row.shape, 0)
            per_row = jnp.where(row < n_valid, per_row, 0.0)
        out_ref[...] = jnp.broadcast_to(jnp.sum(per_row), out_ref.shape)


def cross_entropy_loss(pred: jax.Array, y: jax.Array) -> jax.Array:
    """Mean cross-entropy over rows of `pred` with integer targets `y`.

    pred: (N, C) logits (any float dtype; streamed in native dtype)
    y:    any shape with N total elements, integer class indices
    returns: scalar float32 loss
    """
    n, c = pred.shape
    y1 = y.reshape(-1).astype(jnp.int32)
    assert y1.shape[0] == n

    itemsize = jnp.dtype(pred.dtype).itemsize
    vmem_limit, tile_budget = _vmem_plan()
    tm, tc = _choose_tiles(n, c, itemsize, tile_budget)

    grid_m = pl.cdiv(n, tm)
    grid_c = pl.cdiv(c, tc)

    # Only the tiny target vector is padded; the logits are never copied.
    n_rows = grid_m * tm
    if n_rows != n:
        y1 = jnp.pad(y1, (0, n_rows - n))
    y2d = y1.reshape(n_rows, 1)

    mask_rows = (n % tm) != 0
    mask_cols = (c % tc) != 0

    common = dict(n_valid=n, n_classes=c, tm=tm, tc=tc,
                  mask_rows=mask_rows, mask_cols=mask_cols)

    if grid_c == 1:
        kernel = functools.partial(_ce_kernel_onepass, **common)
        grid_spec = pltpu.PrefetchScalarGridSpec(
            num_scalar_prefetch=0,
            grid=(grid_m,),
            in_specs=[
                pl.BlockSpec((tm, tc), lambda i: (i, 0)),   # logits (native dtype)
                pl.BlockSpec((tm, 1), lambda i: (i, 0)),    # targets
            ],
            out_specs=pl.BlockSpec((1, 8, _LANE), lambda i: (i, 0, 0)),
        )
        dims = ("parallel",)
    else:
        kernel = functools.partial(_ce_kernel_stream, **common)
        grid_spec = pltpu.PrefetchScalarGridSpec(
            num_scalar_prefetch=0,
            grid=(grid_m, grid_c),
            in_specs=[
                pl.BlockSpec((tm, tc), lambda i, k: (i, k)),  # logits (native dtype)
                pl.BlockSpec((tm, 1), lambda i, k: (i, 0)),   # targets
            ],
            out_specs=pl.BlockSpec((1, 8, _LANE), lambda i, k: (i, 0, 0)),
            scratch_shapes=[
                pltpu.VMEM((tm, 1), jnp.float32),   # running max  m
                pltpu.VMEM((tm, 1), jnp.float32),   # running sum  l
                pltpu.VMEM((tm, 1), jnp.float32),   # target logit t
            ],
        )
        dims = ("parallel", "arbitrary")

    partials = pl.pallas_call(
        kernel,
        out_shape=jax.ShapeDtypeStruct((grid_m, 8, _LANE), jnp.float32),
        grid_spec=grid_spec,
        compiler_params=pltpu.CompilerParams(
            dimension_semantics=dims,
            vmem_limit_bytes=vmem_limit,
        ),
    )(pred, y2d)

    # Final reduction over row-tile partial sums; divide by the real N
    # (torch default reduction='mean').
    return jnp.sum(partials[:, 0, 0]) / jnp.float32(n)


if __name__ == "__main__":
    key = jax.random.PRNGKey(0)
    k_pred, k_y, k_pred2, k_y2 = jax.random.split(key, 4)

    # Small shapes matching the module's forward: pred (N, C), y reshaped to (-1).
    N, C = 8, 32
    pred = jax.random.normal(k_pred, (N, C), dtype=jnp.float32)
    y = jax.random.randint(k_y, (N, 1), 0, C, dtype=jnp.int32)

    loss = cross_entropy_loss(pred, y)
    jax.block_until_ready(loss)

    logp = jax.nn.log_softmax(pred, axis=-1)
    ref = -jnp.mean(jnp.take_along_axis(logp, y.reshape(-1, 1), axis=-1))
    assert jnp.allclose(loss, ref, atol=1e-5, rtol=1e-5), (loss, ref)

    # Also exercise the streaming-LSE path (C > class-block width) plus both
    # row/column edge masks with NO wrapper-side padding of the logits.
    N2, C2 = 37, 4100
    pred2 = jax.random.normal(k_pred2, (N2, C2), dtype=jnp.float32)
    y2 = jax.random.randint(k_y2, (N2,), 0, C2, dtype=jnp.int32)
    loss2 = cross_entropy_loss(pred2, y2)
    jax.block_until_ready(loss2)
    logp2 = jax.nn.log_softmax(pred2, axis=-1)
    ref2 = -jnp.mean(jnp.take_along_axis(logp2, y2.reshape(-1, 1), axis=-1))
    assert jnp.allclose(loss2, ref2, atol=1e-4, rtol=1e-4), (loss2, ref2)

    print("KERNEL_OK")
</pallas_src>

<mosaic_0001>
module attributes {stable_mosaic.version = 11 : i64} {
  func.func @_ce_kernel_onepass(%arg0: i32, %arg1: memref<8x32xf32, #tpu.memory_space<vmem>>, %arg2: memref<8x1xi32, #tpu.memory_space<vmem>>, %arg3: memref<1x8x128xf32, #tpu.memory_space<vmem>>) attributes {dimension_semantics = [#tpu.dimension_semantics<parallel>], iteration_bounds = array<i64: 1>, scalar_prefetch = 0 : i64, scratch_operands = 0 : i64, tpu.core_type = #tpu.core_type<tc>, window_params = [{transform_indices = @transform_0, window_bounds = array<i64: 8, 32>}, {transform_indices = @transform_1, window_bounds = array<i64: 8, 1>}, {transform_indices = @transform_2, window_bounds = array<i64: 1, 8, 128>}]} {
    %c0 = arith.constant 0 : index
    %c0_0 = arith.constant 0 : index
    %0 = vector.load %arg1[%c0, %c0_0] : memref<8x32xf32, #tpu.memory_space<vmem>>, vector<8x32xf32>
    %1 = tpu.iota {dimensions = array<i32: 1>} : vector<1x32xi32>
    %cst = arith.constant dense<0xFF800000> : vector<8xf32>
    %2 = vector.multi_reduction <maximumf>, %0, %cst [1] : vector<8x32xf32> to vector<8xf32>
    %3 = vector.shape_cast %2 : vector<8xf32> to vector<8x1xf32>
    %4 = vector.broadcast %3 : vector<8x1xf32> to vector<8x32xf32>
    %5 = arith.subf %0, %4 : vector<8x32xf32>
    %6 = math.exp %5 : vector<8x32xf32>
    %cst_1 = arith.constant dense<0.000000e+00> : vector<8xf32>
    %7 = vector.multi_reduction <add>, %6, %cst_1 [1] : vector<8x32xf32> to vector<8xf32>
    %8 = vector.shape_cast %7 : vector<8xf32> to vector<8x1xf32>
    %c0_2 = arith.constant 0 : index
    %c0_3 = arith.constant 0 : index
    %9 = vector.load %arg2[%c0_2, %c0_3] : memref<8x1xi32, #tpu.memory_space<vmem>>, vector<8x1xi32>
    %10 = vector.broadcast %1 : vector<1x32xi32> to vector<8x32xi32>
    %11 = vector.broadcast %9 : vector<8x1xi32> to vector<8x32xi32>
    %12 = arith.cmpi eq, %10, %11 : vector<8x32xi32>
    %cst_4 = arith.constant 0.000000e+00 : f32
    %13 = vector.broadcast %cst_4 : f32 to vector<8x32xf32>
    %14 = arith.select %12, %0, %13 : vector<8x32xi1>, vector<8x32xf32>
    %cst_5 = arith.constant dense<0.000000e+00> : vector<8xf32>
    %15 = vector.multi_reduction <add>, %14, %cst_5 [1] : vector<8x32xf32> to vector<8xf32>
    %16 = vector.shape_cast %15 : vector<8xf32> to vector<8x1xf32>
    %17 = math.log %8 : vector<8x1xf32>
    %18 = arith.addf %3, %17 : vector<8x1xf32>
    %19 = arith.subf %18, %16 : vector<8x1xf32>
    %20 = vector.shape_cast %19 : vector<8x1xf32> to vector<1x8x1xf32>
    %cst_6 = arith.constant dense<0.000000e+00> : vector<1xf32>
    %21 = vector.multi_reduction <add>, %20, %cst_6 [1, 2] : vector<1x8x1xf32> to vector<1xf32>
    %22 = vector.shape_cast %21 : vector<1xf32> to vector<1x1x1xf32>
    %23 = vector.extract %22[0, 0, 0] : f32 from vector<1x1x1xf32>
    %24 = vector.broadcast %23 : f32 to vector<1x8x128xf32>
    %c0_7 = arith.constant 0 : index
    %c0_8 = arith.constant 0 : index
    %c0_9 = arith.constant 0 : index
    %25 = vector.load %arg3[%c0_7, %c0_8, %c0_9] : memref<1x8x128xf32, #tpu.memory_space<vmem>>, vector<1x8x128xf32>
    tpu.vector_store %arg3[%c0_7, %c0_8, %c0_9], %24 {strides = array<i32>} : memref<1x8x128xf32, #tpu.memory_space<vmem>>, vector<1x8x128xf32>,
    return
  }
  func.func @transform_0(%arg0: i32) -> (i32, i32) {
    %c0_i32 = arith.constant 0 : i32
    %c0_i32_0 = arith.constant 0 : i32
    return %arg0, %c0_i32 : i32, i32
  }
  func.func @transform_1(%arg0: i32) -> (i32, i32) {
    %c0_i32 = arith.constant 0 : i32
    %c0_i32_0 = arith.constant 0 : i32
    return %arg0, %c0_i32 : i32, i32
  }
  func.func @transform_2(%arg0: i32) -> (i32, i32, i32) {
    %c0_i32 = arith.constant 0 : i32
    %c0_i32_0 = arith.constant 0 : i32
    %c0_i32_1 = arith.constant 0 : i32
    return %arg0, %c0_i32, %c0_i32_0 : i32, i32, i32
  }
}

</mosaic_0001>

<llo_original>
// kernel: tpu_custom_call.1
$region0: #{tpu_custom_call.1}
  #allocation0 [shape = 'u32[]', space=smem, size = 0x4, offset = 0x4, fixed_abs, tag = 'smem constant byte address 0x4 - core index']
  #allocation1 [shape = 'u32[144,128]{1,0:T(1,128)}', space=vmem, size = 0x12000, scoped, tag = 'internal scratch']
  %s0 = inlined_call_operand.vmem [shape: f32[8,32], index: 0, kind: input, shape index: {}]
  %s1 = inlined_call_operand.vmem [shape: s32[8,1], index: 1, kind: input, shape index: {}]
  %s2 = inlined_call_operand.hbm [shape: f32[1,8,128], index: 2, kind: output, shape index: {}]
  %s3 = sld [smem:[#allocation0]]
  $region18: #{tpu_custom_call.1} parent=0
    _
  %s5 = ssub.s32 1, %s3
  %s6 = scalar_select 0, %s5, %s3
  $region1: #{tpu_custom_call.1} parent=0
    #allocation2 [shape = 'u8[4096]{0}', space=vmem, size = 0x1000, scoped, tag = 'output window, operand 0, single buffered']
    #allocation3 [shape = 's32[1]{0}', space=sflag, size = 0x4, scoped, tag = 'scoped memory for tpu_custom_call.1']
    %7 = vsyncpa [#allocation3], 0
    // Predicated region
    $region2: #{tpu_custom_call.1} parent=1 // pred_check
      _
    $region3: #{tpu_custom_call.1} parent=1 // pred_check_branch
      %9 = sbr.rel (0) target = $region5
    $region4: #{tpu_custom_call.1} parent=1 // pred_region
      _
    $region5: #{tpu_custom_call.1} parent=1 // pred_fallthru
      _
    // Predicated region
    $region6: #{tpu_custom_call.1} parent=1 // pred_check
      _
    $region7: #{tpu_custom_call.1} parent=1 // pred_check_branch
      %11 = sbr.rel (0) target = $region9
    $region8: #{tpu_custom_call.1} parent=1 // pred_region
      _
    $region9: #{tpu_custom_call.1} parent=1 // pred_fallthru
      _
    %v12 = vld [vmem:[%s0] sm:$0xff]
    %v13 = vlaneseq
    %v14 = vand.u32 %v13, 127
    %vm15 = vcmask 261120
    %v16 = vsel %vm15, %v12, -inf
    %17 = vmax.xlane.f32.xlu0 %v16
    %v18 = vpop.xlane.xlu0 %17
    %v19 = vsub.f32 %v12, %v18
    %v20 = vmul.f32 %v19, 1.442695
    %v21 = vpow.pop %v20
    %v22 = vsel %vm15, %v21, 0.0
    %23 = vadd.xlane.f32.xlu0 %v22
    %v24 = vpop.xlane.xlu0 %23
    %v25 = vld [vmem:[%s1] sm:$0xff]
    %26 = vset.pattern.permute.xlu0 0
    %27 = vperm.xlu0 %26, %v25
    %v28 = vpop.permute.xlu0 %27
    %vm29 = vcmp.eq.s32.totalorder %v14, %v28
    %v30 = vsel %vm29, %v12, 0.0
    %v31 = vsel %vm15, %v30, 0.0
    %32 = vadd.xlane.f32.xlu0 %v31
    %v33 = vpop.xlane.xlu0 %32
    %v34 = vlog2.pop %v24
    %v35 = vmul.f32 %v34, 0.6931472
    %v36 = vadd.f32 %v18, %v35
    %v37 = vsub.f32 %v36, %v33
    %vm38 = vcmask 7168
    %v39 = vsel %vm38, %v37, 0.0
    %40 = vadd.xlane.f32.xlu0 %v39
    %v41 = vpop.xlane.xlu0 %40
    %v42 = vrot.slane %v41, 4
    %v43 = vadd.f32 %v41, %v42
    %v44 = vrot.slane %v43, 2
    %v45 = vadd.f32 %v43, %v44
    %v46 = vrot.slane %v45, 1
    %v47 = vadd.f32 %v45, %v46
    %s48 = vtos %v47
    %v49 = vstv %s48
    %50 = vst [vmem:[#allocation2] sm:$0xff] %v49
    // Predicated region
    $region10: #{tpu_custom_call.1} parent=1 // pred_check
      _
    $region11: #{tpu_custom_call.1} parent=1 // pred_check_branch
      %52 = sbr.rel (0) target = $region13
    $region12: #{tpu_custom_call.1} parent=1 // pred_region
      %s54 = ssub.s32 128, 128
      %55 = vsyncadd [#allocation3], %s54
      %s57 = sshll.u32 [#allocation2], 4
      %s58 = int_to_ptr.vmem [resolvable:$true] %s57
      %60 = dma.vmem_to_hbm [thread:$0]  %s58, 128, %s2, [#allocation3]
    $region13: #{tpu_custom_call.1} parent=1 // pred_fallthru
      _
    // Predicated region
    $region14: #{tpu_custom_call.1} parent=1 // pred_check
      _
    $region15: #{tpu_custom_call.1} parent=1 // pred_check_branch
      %62 = sbr.rel (0) target = $region17
    $region16: #{tpu_custom_call.1} parent=1 // pred_region
      %63 = dma.done [#allocation3], 128
    $region17: #{tpu_custom_call.1} parent=1 // pred_fallthru
      _
    %64 = vsyncpa [#allocation3], 1

</llo_original>
